<compile_context>
chip_gen: v7x
topology: tpu7x:2x2x1
jax: 0.10.0
libtpu: 0.0.40
codegen_flags: <defaults>
</compile_context>

<pallas_src>
import functools

import jax
import jax.numpy as jnp
import numpy as np
from jax.experimental import pallas as pl
from jax.experimental.pallas import tpu as pltpu


_SQRT_2_OVER_PI = 0.7978845608028654


def _gelu(x):
    # tanh-approximate GELU (runs on VPU + EUP).
    # TODO(synk): PyTorch nn.GELU() defaults to the exact erf form; the tanh
    # approximation is used here (max abs deviation ~1e-3) since erf has no
    # clean Mosaic lowering while tanh maps directly to the EUP.
    x3 = x * x * x
    return 0.5 * x * (1.0 + jnp.tanh(_SQRT_2_OVER_PI * (x + 0.044715 * x3)))


def _mlp_star_kernel(x_ref, y_ref, w1_ref, b1_ref, w2_ref, b2_ref, o_ref):
    # x_ref : (TM, Din) f32   y_ref : (TM, H) f32
    # w1_ref: (Din, H)  bf16  w2_ref: (H, H)  bf16
    # b1/b2 : (1, H)    f32   o_ref : (TM, H) f32
    x_bf = x_ref[...].astype(jnp.bfloat16)          # in-kernel cast: no extra HBM pass
    h = jnp.dot(x_bf, w1_ref[...], preferred_element_type=jnp.float32)
    h = _gelu(h + b1_ref[...])                                   # fc1 + GELU
    z = jnp.dot(h.astype(jnp.bfloat16), w2_ref[...],
                preferred_element_type=jnp.float32)
    z = z + b2_ref[...]                                          # fc2
    o_ref[...] = (z * _gelu(y_ref[...])).astype(o_ref.dtype)     # star gating


def _round_up(v, m):
    return (v + m - 1) // m * m


@functools.partial(jax.jit, static_argnames=("block_m",))
def mlp_lowrank_star_forward(x, y, w1, b1, w2, b2, *, block_m=1024):
    """x: (..., Din), y: (..., H); w1: (H, Din), b1: (H,), w2: (H, H), b2: (H,).

    Returns GELU(x @ W1^T + b1) @ W2^T + b2, gated elementwise by GELU(y);
    shape (..., H), float32.
    """
    Din = x.shape[-1]
    H = w1.shape[0]
    out_shape = y.shape

    x2 = x.reshape(-1, Din)
    y2 = y.reshape(-1, H)
    M = x2.shape[0]

    # M tile: multiple of 16 (bf16 sublane packing).  If the whole problem would
    # fit in one tile but M is reasonably large, split into two tiles so the
    # "parallel" M axis can shard across v7x's two TensorCores.
    tm = min(block_m, _round_up(M, 16))
    if tm >= M and M > 256:
        tm = _round_up(-(-M // 2), 16)          # ceil(M/2), rounded to 16
    Mp = _round_up(M, tm)

    if Mp != M:                                  # only the M axis ever gets padded
        x2 = jnp.pad(x2, ((0, Mp - M), (0, 0)))
        y2 = jnp.pad(y2, ((0, Mp - M), (0, 0)))

    # Tiny, one-time weight/bias prep; weights stay VMEM-resident across M tiles.
    w1_bf = w1.T.astype(jnp.bfloat16)            # (Din, H)
    w2_bf = w2.T.astype(jnp.bfloat16)            # (H, H)
    b1r = b1.astype(jnp.float32).reshape(1, H)
    b2r = b2.astype(jnp.float32).reshape(1, H)

    grid = (Mp // tm,)
    flops = 2 * Mp * Din * H + 2 * Mp * H * H
    transcendentals = 2 * Mp * H                 # two GELUs (tanh) per out element
    bytes_accessed = (Mp * Din * 4 + Mp * H * 4  # x, y (f32, true widths)
                      + Din * H * 2 + H * H * 2  # W1, W2 (bf16)
                      + 2 * H * 4                # biases
                      + Mp * H * 4)              # output (f32)

    out = pl.pallas_call(
        _mlp_star_kernel,
        out_shape=jax.ShapeDtypeStruct((Mp, H), jnp.float32),
        grid_spec=pltpu.PrefetchScalarGridSpec(
            num_scalar_prefetch=0,
            grid=grid,
            in_specs=[
                pl.BlockSpec((tm, Din), lambda i: (i, 0)),   # x tile (streamed, f32)
                pl.BlockSpec((tm, H), lambda i: (i, 0)),     # y tile (streamed, f32)
                pl.BlockSpec((Din, H), lambda i: (0, 0)),    # W1 (VMEM-resident, bf16)
                pl.BlockSpec((1, H), lambda i: (0, 0)),      # b1 (VMEM-resident)
                pl.BlockSpec((H, H), lambda i: (0, 0)),      # W2 (VMEM-resident, bf16)
                pl.BlockSpec((1, H), lambda i: (0, 0)),      # b2 (VMEM-resident)
            ],
            out_specs=pl.BlockSpec((tm, H), lambda i: (i, 0)),
        ),
        compiler_params=pltpu.CompilerParams(
            dimension_semantics=("parallel",),
            vmem_limit_bytes=32 * 1024 * 1024),
        cost_estimate=pl.CostEstimate(
            flops=flops,
            transcendentals=transcendentals,
            bytes_accessed=bytes_accessed),
    )(x2, y2, w1_bf, b1r, w2_bf, b2r)

    if Mp != M:
        out = out[:M]
    return out.reshape(out_shape)


# ----------------------------- references ----------------------------------

def _reference_f32(x, y, w1, b1, w2, b2):
    """Pure-JAX f32 mirror of the PyTorch module (tanh-GELU, drop=0, Identity norm)."""
    h = _gelu(jnp.dot(x, w1.T) + b1)
    z = jnp.dot(h, w2.T) + b2
    return z * _gelu(y)


def _reference_bf16(x, y, w1, b1, w2, b2):
    """Reference at the kernel's precision (bf16 matmul operands, f32 accumulation)."""
    h = jnp.dot(x.astype(jnp.bfloat16), w1.T.astype(jnp.bfloat16),
                preferred_element_type=jnp.float32) + b1
    h = _gelu(h)
    z = jnp.dot(h.astype(jnp.bfloat16), w2.T.astype(jnp.bfloat16),
                preferred_element_type=jnp.float32) + b2
    return z * _gelu(y)


if __name__ == "__main__":
    # module config: Mlp_lowrank_star(in_features=32, hidden_features=64)
    in_features, hidden_features = 32, 64
    B, S = 2, 8

    key = jax.random.PRNGKey(0)
    kx, ky, kw1, kb1, kw2, kb2, kx2, ky2 = jax.random.split(key, 8)

    x = jax.random.normal(kx, (B, S, in_features), dtype=jnp.float32)
    y = jax.random.normal(ky, (B, S, hidden_features), dtype=jnp.float32)

    # nn.Linear-style parameters: weight (out, in), bias (out,)
    bound1 = 1.0 / np.sqrt(in_features)
    w1 = jax.random.uniform(kw1, (hidden_features, in_features),
                            minval=-bound1, maxval=bound1, dtype=jnp.float32)
    b1 = jax.random.uniform(kb1, (hidden_features,),
                            minval=-bound1, maxval=bound1, dtype=jnp.float32)
    bound2 = 1.0 / np.sqrt(hidden_features)
    w2 = jax.random.uniform(kw2, (hidden_features, hidden_features),
                            minval=-bound2, maxval=bound2, dtype=jnp.float32)
    b2 = jax.random.uniform(kb2, (hidden_features,),
                            minval=-bound2, maxval=bound2, dtype=jnp.float32)

    out = mlp_lowrank_star_forward(x, y, w1, b1, w2, b2)
    out = jax.block_until_ready(out)

    # 1) tight check against a reference at the kernel's (bf16-matmul) precision
    np.testing.assert_allclose(np.asarray(out),
                               np.asarray(_reference_bf16(x, y, w1, b1, w2, b2)),
                               rtol=1e-2, atol=1e-2)
    # 2) sanity check against the full-f32 module semantics
    np.testing.assert_allclose(np.asarray(out),
                               np.asarray(_reference_f32(x, y, w1, b1, w2, b2)),
                               rtol=3e-2, atol=3e-2)

    # Larger run to exercise the multi-tile ("parallel") M grid path (grid=2).
    x_big = jax.random.normal(kx2, (4, 512, in_features), dtype=jnp.float32)
    y_big = jax.random.normal(ky2, (4, 512, hidden_features), dtype=jnp.float32)
    out_big = jax.block_until_ready(
        mlp_lowrank_star_forward(x_big, y_big, w1, b1, w2, b2))
    np.testing.assert_allclose(
        np.asarray(out_big),
        np.asarray(_reference_bf16(x_big, y_big, w1, b1, w2, b2)),
        rtol=1e-2, atol=1e-2)

    # Ragged-M path (exercises the M-only padding + slice).
    x_rag = jax.random.normal(kx2, (3, 111, in_features), dtype=jnp.float32)
    y_rag = jax.random.normal(ky2, (3, 111, hidden_features), dtype=jnp.float32)
    out_rag = jax.block_until_ready(
        mlp_lowrank_star_forward(x_rag, y_rag, w1, b1, w2, b2))
    np.testing.assert_allclose(
        np.asarray(out_rag),
        np.asarray(_reference_bf16(x_rag, y_rag, w1, b1, w2, b2)),
        rtol=1e-2, atol=1e-2)

    print("KERNEL_OK")
</pallas_src>

<mosaic_0001>
module attributes {stable_mosaic.version = 11 : i64} {
  func.func @_mlp_star_kernel(%arg0: i32, %arg1: memref<16x32xf32, #tpu.memory_space<vmem>>, %arg2: memref<16x64xf32, #tpu.memory_space<vmem>>, %arg3: memref<32x64xbf16, #tpu.memory_space<vmem>>, %arg4: memref<1x64xf32, #tpu.memory_space<vmem>>, %arg5: memref<64x64xbf16, #tpu.memory_space<vmem>>, %arg6: memref<1x64xf32, #tpu.memory_space<vmem>>, %arg7: memref<16x64xf32, #tpu.memory_space<vmem>>) attributes {dimension_semantics = [#tpu.dimension_semantics<parallel>], iteration_bounds = array<i64: 1>, scalar_prefetch = 0 : i64, scratch_operands = 0 : i64, tpu.core_type = #tpu.core_type<tc>, window_params = [{transform_indices = @transform_0, window_bounds = array<i64: 16, 32>}, {transform_indices = @transform_1, window_bounds = array<i64: 16, 64>}, {pipeline_mode = #tpu.pipeline_mode<synchronous>, transform_indices = @transform_2, window_bounds = array<i64: 32, 64>}, {pipeline_mode = #tpu.pipeline_mode<synchronous>, transform_indices = @transform_3, window_bounds = array<i64: 1, 64>}, {pipeline_mode = #tpu.pipeline_mode<synchronous>, transform_indices = @transform_4, window_bounds = array<i64: 64, 64>}, {pipeline_mode = #tpu.pipeline_mode<synchronous>, transform_indices = @transform_5, window_bounds = array<i64: 1, 64>}, {transform_indices = @transform_6, window_bounds = array<i64: 16, 64>}]} {
    %c0 = arith.constant 0 : index
    %c0_0 = arith.constant 0 : index
    %0 = vector.load %arg1[%c0, %c0_0] : memref<16x32xf32, #tpu.memory_space<vmem>>, vector<16x32xf32>
    %1 = arith.truncf %0 : vector<16x32xf32> to vector<16x32xbf16>
    %c0_1 = arith.constant 0 : index
    %c0_2 = arith.constant 0 : index
    %2 = vector.load %arg3[%c0_1, %c0_2] : memref<32x64xbf16, #tpu.memory_space<vmem>>, vector<32x64xbf16>
    %cst = arith.constant dense<0.000000e+00> : vector<16x64xf32>
    %3 = tpu.matmul %1, %2, %cst {dimension_numbers = #tpu.dot_dimension_numbers<[1], [0], [0], [1], [0, 0, 1, 1], [], []>} : vector<16x32xbf16>, vector<32x64xbf16>, vector<16x64xf32> -> vector<16x64xf32>
    %c0_3 = arith.constant 0 : index
    %c0_4 = arith.constant 0 : index
    %4 = vector.load %arg4[%c0_3, %c0_4] : memref<1x64xf32, #tpu.memory_space<vmem>>, vector<1x64xf32>
    %5 = vector.broadcast %4 : vector<1x64xf32> to vector<16x64xf32>
    %6 = arith.addf %3, %5 : vector<16x64xf32>
    %7 = arith.mulf %6, %6 : vector<16x64xf32>
    %8 = arith.mulf %7, %6 : vector<16x64xf32>
    %cst_5 = arith.constant 5.000000e-01 : f32
    %9 = vector.broadcast %cst_5 : f32 to vector<16x64xf32>
    %10 = arith.mulf %9, %6 : vector<16x64xf32>
    %cst_6 = arith.constant 4.471500e-02 : f32
    %11 = vector.broadcast %cst_6 : f32 to vector<16x64xf32>
    %12 = arith.mulf %11, %8 : vector<16x64xf32>
    %13 = arith.addf %6, %12 : vector<16x64xf32>
    %cst_7 = arith.constant 0.797884583 : f32
    %14 = vector.broadcast %cst_7 : f32 to vector<16x64xf32>
    %15 = arith.mulf %14, %13 : vector<16x64xf32>
    %16 = math.tanh %15 : vector<16x64xf32>
    %cst_8 = arith.constant 1.000000e+00 : f32
    %17 = vector.broadcast %cst_8 : f32 to vector<16x64xf32>
    %18 = arith.addf %17, %16 : vector<16x64xf32>
    %19 = arith.mulf %10, %18 : vector<16x64xf32>
    %20 = arith.truncf %19 : vector<16x64xf32> to vector<16x64xbf16>
    %c0_9 = arith.constant 0 : index
    %c0_10 = arith.constant 0 : index
    %21 = vector.load %arg5[%c0_9, %c0_10] : memref<64x64xbf16, #tpu.memory_space<vmem>>, vector<64x64xbf16>
    %cst_11 = arith.constant dense<0.000000e+00> : vector<16x64xf32>
    %22 = tpu.matmul %20, %21, %cst_11 {dimension_numbers = #tpu.dot_dimension_numbers<[1], [0], [0], [1], [0, 0, 1, 1], [], []>} : vector<16x64xbf16>, vector<64x64xbf16>, vector<16x64xf32> -> vector<16x64xf32>
    %c0_12 = arith.constant 0 : index
    %c0_13 = arith.constant 0 : index
    %23 = vector.load %arg6[%c0_12, %c0_13] : memref<1x64xf32, #tpu.memory_space<vmem>>, vector<1x64xf32>
    %24 = vector.broadcast %23 : vector<1x64xf32> to vector<16x64xf32>
    %25 = arith.addf %22, %24 : vector<16x64xf32>
    %c0_14 = arith.constant 0 : index
    %c0_15 = arith.constant 0 : index
    %26 = vector.load %arg2[%c0_14, %c0_15] : memref<16x64xf32, #tpu.memory_space<vmem>>, vector<16x64xf32>
    %27 = arith.mulf %26, %26 : vector<16x64xf32>
    %28 = arith.mulf %27, %26 : vector<16x64xf32>
    %cst_16 = arith.constant 5.000000e-01 : f32
    %29 = vector.broadcast %cst_16 : f32 to vector<16x64xf32>
    %30 = arith.mulf %29, %26 : vector<16x64xf32>
    %cst_17 = arith.constant 4.471500e-02 : f32
    %31 = vector.broadcast %cst_17 : f32 to vector<16x64xf32>
    %32 = arith.mulf %31, %28 : vector<16x64xf32>
    %33 = arith.addf %26, %32 : vector<16x64xf32>
    %cst_18 = arith.constant 0.797884583 : f32
    %34 = vector.broadcast %cst_18 : f32 to vector<16x64xf32>
    %35 = arith.mulf %34, %33 : vector<16x64xf32>
    %36 = math.tanh %35 : vector<16x64xf32>
    %cst_19 = arith.constant 1.000000e+00 : f32
    %37 = vector.broadcast %cst_19 : f32 to vector<16x64xf32>
    %38 = arith.addf %37, %36 : vector<16x64xf32>
    %39 = arith.mulf %30, %38 : vector<16x64xf32>
    %40 = arith.mulf %25, %39 : vector<16x64xf32>
    %c0_20 = arith.constant 0 : index
    %c0_21 = arith.constant 0 : index
    %41 = vector.load %arg7[%c0_20, %c0_21] : memref<16x64xf32, #tpu.memory_space<vmem>>, vector<16x64xf32>
    tpu.vector_store %arg7[%c0_20, %c0_21], %40 {strides = array<i32>} : memref<16x64xf32, #tpu.memory_space<vmem>>, vector<16x64xf32>,
    return
  }
  func.func @transform_0(%arg0: i32) -> (i32, i32) {
    %c0_i32 = arith.constant 0 : i32
    %c0_i32_0 = arith.constant 0 : i32
    return %arg0, %c0_i32 : i32, i32
  }
  func.func @transform_1(%arg0: i32) -> (i32, i32) {
    %c0_i32 = arith.constant 0 : i32
    %c0_i32_0 = arith.constant 0 : i32
    return %arg0, %c0_i32 : i32, i32
  }
  func.func @transform_2(%arg0: i32) -> (i32, i32) {
    %c0_i32 = arith.constant 0 : i32
    %c0_i32_0 = arith.constant 0 : i32
    %c0_i32_1 = arith.constant 0 : i32
    return %c0_i32, %c0_i32_0 : i32, i32
  }
  func.func @transform_3(%arg0: i32) -> (i32, i32) {
    %c0_i32 = arith.constant 0 : i32
    %c0_i32_0 = arith.constant 0 : i32
    %c0_i32_1 = arith.constant 0 : i32
    return %c0_i32, %c0_i32_0 : i32, i32
  }
  func.func @transform_4(%arg0: i32) -> (i32, i32) {
    %c0_i32 = arith.constant 0 : i32
    %c0_i32_0 = arith.constant 0 : i32
    %c0_i32_1 = arith.constant 0 : i32
    return %c0_i32, %c0_i32_0 : i32, i32
  }
  func.func @transform_5(%arg0: i32) -> (i32, i32) {
    %c0_i32 = arith.constant 0 : i32
    %c0_i32_0 = arith.constant 0 : i32
    %c0_i32_1 = arith.constant 0 : i32
    return %c0_i32, %c0_i32_0 : i32, i32
  }
  func.func @transform_6(%arg0: i32) -> (i32, i32) {
    %c0_i32 = arith.constant 0 : i32
    %c0_i32_0 = arith.constant 0 : i32
    return %arg0, %c0_i32 : i32, i32
  }
}

</mosaic_0001>

<llo_original>
// kernel: mlp_lowrank_star_forward.1
$region0: #{mlp_lowrank_star_forward.1}
  #allocation0 [shape = 'u32[]', space=smem, size = 0x4, offset = 0x4, fixed_abs, tag = 'smem constant byte address 0x4 - core index']
  #allocation1 [shape = 'u32[144,128]{1,0:T(1,128)}', space=vmem, size = 0x12000, scoped, tag = 'internal scratch']
  %s0 = inlined_call_operand.vmem [shape: f32[16,32], index: 0, kind: input, shape index: {}]
  %s1 = inlined_call_operand.vmem [shape: f32[16,64], index: 1, kind: input, shape index: {}]
  %s2 = inlined_call_operand.vmem [shape: bf16[32,64], index: 2, kind: input, shape index: {}]
  %s3 = inlined_call_operand.vmem [shape: f32[1,64], index: 3, kind: input, shape index: {}]
  %s4 = inlined_call_operand.vmem [shape: bf16[64,64], index: 4, kind: input, shape index: {}]
  %s5 = inlined_call_operand.vmem [shape: f32[1,64], index: 5, kind: input, shape index: {}]
  %s6 = inlined_call_operand.hbm [shape: f32[16,64], index: 6, kind: output, shape index: {}]
  %s7 = sld [smem:[#allocation0]]
  $region34: #{mlp_lowrank_star_forward.1} parent=0
    _
  %s9 = ssub.s32 1, %s7
  %s10 = scalar_select 0, %s9, %s7
  $region1: #{mlp_lowrank_star_forward.1} parent=0
    #allocation2 [shape = 'u8[8192]{0}', space=vmem, size = 0x2000, scoped, tag = 'output window, operand 0, single buffered']
    #allocation3 [shape = 's32[1]{0}', space=sflag, size = 0x4, scoped, tag = 'scoped memory for mlp_lowrank_star_forward.1']
    %11 = vsyncpa [#allocation3], 0
    // Predicated region
    $region2: #{mlp_lowrank_star_forward.1} parent=1 // pred_check
      _
    $region3: #{mlp_lowrank_star_forward.1} parent=1 // pred_check_branch
      %13 = sbr.rel (0) target = $region5
    $region4: #{mlp_lowrank_star_forward.1} parent=1 // pred_region
      _
    $region5: #{mlp_lowrank_star_forward.1} parent=1 // pred_fallthru
      _
    // Predicated region
    $region6: #{mlp_lowrank_star_forward.1} parent=1 // pred_check
      _
    $region7: #{mlp_lowrank_star_forward.1} parent=1 // pred_check_branch
      %15 = sbr.rel (0) target = $region9
    $region8: #{mlp_lowrank_star_forward.1} parent=1 // pred_region
      _
    $region9: #{mlp_lowrank_star_forward.1} parent=1 // pred_fallthru
      _
    // Predicated region
    $region10: #{mlp_lowrank_star_forward.1} parent=1 // pred_check
      _
    $region11: #{mlp_lowrank_star_forward.1} parent=1 // pred_check_branch
      %17 = sbr.rel (0) target = $region13
    $region12: #{mlp_lowrank_star_forward.1} parent=1 // pred_region
      _
    $region13: #{mlp_lowrank_star_forward.1} parent=1 // pred_fallthru
      _
    // Predicated region
    $region14: #{mlp_lowrank_star_forward.1} parent=1 // pred_check
      _
    $region15: #{mlp_lowrank_star_forward.1} parent=1 // pred_check_branch
      %19 = sbr.rel (0) target = $region17
    $region16: #{mlp_lowrank_star_forward.1} parent=1 // pred_region
      _
    $region17: #{mlp_lowrank_star_forward.1} parent=1 // pred_fallthru
      _
    // Predicated region
    $region18: #{mlp_lowrank_star_forward.1} parent=1 // pred_check
      _
    $region19: #{mlp_lowrank_star_forward.1} parent=1 // pred_check_branch
      %21 = sbr.rel (0) target = $region21
    $region20: #{mlp_lowrank_star_forward.1} parent=1 // pred_region
      _
    $region21: #{mlp_lowrank_star_forward.1} parent=1 // pred_fallthru
      _
    // Predicated region
    $region22: #{mlp_lowrank_star_forward.1} parent=1 // pred_check
      _
    $region23: #{mlp_lowrank_star_forward.1} parent=1 // pred_check_branch
      %23 = sbr.rel (0) target = $region25
    $region24: #{mlp_lowrank_star_forward.1} parent=1 // pred_region
      _
    $region25: #{mlp_lowrank_star_forward.1} parent=1 // pred_fallthru
      _
    %v25 = vld [vmem:[%s0] sm:$0xff]
    %v26 = vld [vmem:[%s0 + $0x8] sm:$0xff]
    %v27 = vpack.c.bf16 %v26, %v25
    %v28 = vld [vmem:[%s2] sm:$0xf]
    %v29 = vld [vmem:[%s2 + $0x4] sm:$0xf]
    %v30 = vld [vmem:[%s2 + $0x8] sm:$0xf]
    %v31 = vld [vmem:[%s2 + $0xc] sm:$0xf]
    %v32 = vld [vmem:[%s3] sm:$0x1]
    %v34 = vlaneseq
    %v35 = vshrl.u32 %v34, 7
    %v36 = vsub.s32 0, %v35
    %v37 = vrot.slane %v32, %v36
    %v43 = vunpack.c.l.b16 %v28
    %v44 = vunpack.c.l.b16 %v29
    %v45 = vunpack.c.l.b16 %v30
    %v46 = vunpack.c.l.b16 %v31
    %v47 = vpack.c.b16 %v44, %v43
    %v48 = vpack.c.b16 %v46, %v45
    %vm51 = vcmask 261120
    %v53 = vsel %vm51, %v27, 0
    %55 = vmatprep.subr.bf16.mxu0 0
    %56 = vmatpush1.bf16.msra.mxu0 %v47
    %57 = vmatprep.subr.bf16.mxu0 0
    %58 = vmatpush1.bf16.msra.mxu0 %v48
    %59 = vmatprep.subr.bf16.mxu0 0
    %60 = vmatpush1.bf16.msra.mxu0 0
    %61 = vmatprep.subr.bf16.mxu0 0
    %62 = vmatpush1.bf16.msra.mxu0 0
    %63 = vmatprep.subr.bf16.mxu0 0
    %64 = vmatpush1.bf16.msra.mxu0 0
    %65 = vmatprep.subr.bf16.mxu0 0
    %66 = vmatpush1.bf16.msra.mxu0 0
    %67 = vmatprep.subr.bf16.mxu0 0
    %68 = vmatpush1.bf16.msra.mxu0 0
    %69 = vmatprep.subr.bf16.mxu0 0
    %70 = vmatpush1.bf16.msra.mxu0 0
    %71 = vmatprep.subr.bf16.mxu0 0
    %72 = vmatpush1.bf16.msra.mxu0 0
    %73 = vmatprep.subr.bf16.mxu0 0
    %74 = vmatpush1.bf16.msra.mxu0 0
    %75 = vmatprep.subr.bf16.mxu0 0
    %76 = vmatpush1.bf16.msra.mxu0 0
    %77 = vmatprep.subr.bf16.mxu0 0
    %78 = vmatpush1.bf16.msra.mxu0 0
    %79 = vmatprep.subr.bf16.mxu0 0
    %80 = vmatpush1.bf16.msra.mxu0 0
    %81 = vmatprep.subr.bf16.mxu0 0
    %82 = vmatpush1.bf16.msra.mxu0 0
    %83 = vmatprep.subr.bf16.mxu0 0
    %84 = vmatpush1.bf16.msra.mxu0 0
    %85 = vmatprep.subr.bf16.mxu0 0
    %86 = vmatpush1.bf16.msra.mxu0 0
    %87 = vmatprep.mubr.bf16.mxu0 0
    %88 = vmatmul.mubr.bf16.gmra.mrb[0].mxu0 %v53
    %v89 = vpop.f32.mrb[0].mxu0
    %v90 = vadd.f32 %v37, %v89
    %v91 = vpop.f32.mrb[0].mxu0
    %v92 = vpop.f32.mrb[0].mxu0
    %v93 = vadd.f32 %v37, %v92
    %v94 = vpop.f32.mrb[0].mxu0
    %95 = vdwg.mxu0
    %v96 = vmul.f32 %v90, %v90
    %v97 = vmul.f32 %v93, %v93
    %v98 = vmul.f32 %v96, %v90
    %v99 = vmul.f32 %v97, %v93
    %v100 = vmul.f32 %v90, 0.5
    %v101 = vmul.f32 %v93, 0.5
    %v102 = vmul.f32 %v98, 0.044715
    %v103 = vmul.f32 %v99, 0.044715
    %v104 = vadd.f32 %v90, %v102
    %v105 = vadd.f32 %v93, %v103
    %v106 = vmul.f32 %v104, 0.7978846
    %v107 = vmul.f32 %v105, 0.7978846
    %v108 = vtanh.pop %v106
    %v109 = vtanh.pop %v107
    %v110 = vadd.f32 %v108, 1.0
    %v111 = vadd.f32 %v109, 1.0
    %v112 = vmul.f32 %v100, %v110
    %v113 = vmul.f32 %v101, %v111
    %v114 = vpack.c.bf16 %v113, %v112
    %v115 = vld [vmem:[%s4] sm:$0xf]
    %v116 = vld [vmem:[%s4 + $0x4] sm:$0xf]
    %v117 = vld [vmem:[%s4 + $0x8] sm:$0xf]
    %v118 = vld [vmem:[%s4 + $0xc] sm:$0xf]
    %v119 = vld [vmem:[%s4 + $0x10] sm:$0xf]
    %v120 = vld [vmem:[%s4 + $0x14] sm:$0xf]
    %v121 = vld [vmem:[%s4 + $0x18] sm:$0xf]
    %v122 = vld [vmem:[%s4 + $0x1c] sm:$0xf]
    %v123 = vld [vmem:[%s5] sm:$0x1]
    %v125 = vlaneseq
    %v126 = vshrl.u32 %v125, 7
    %v127 = vsub.s32 0, %v126
    %v128 = vrot.slane %v123, %v127
    %v138 = vunpack.c.l.b16 %v115
    %v139 = vunpack.c.l.b16 %v116
    %v140 = vunpack.c.l.b16 %v117
    %v141 = vunpack.c.l.b16 %v118
    %v142 = vunpack.c.l.b16 %v119
    %v143 = vunpack.c.l.b16 %v120
    %v144 = vunpack.c.l.b16 %v121
    %v145 = vunpack.c.l.b16 %v122
    %v146 = vpack.c.b16 %v139, %v138
    %v147 = vpack.c.b16 %v141, %v140
    %v148 = vpack.c.b16 %v143, %v142
    %v149 = vpack.c.b16 %v145, %v144
    %vm154 = vcmask 523264
    %v156 = vsel %vm154, %v114, 0
    %158 = vmatprep.subr.bf16.mxu0 0
    %159 = vmatpush1.bf16.msra.mxu0 %v146
    %160 = vmatprep.subr.bf16.mxu0 0
    %161 = vmatpush1.bf16.msra.mxu0 %v147
    %162 = vmatprep.subr.bf16.mxu0 0
    %163 = vmatpush1.bf16.msra.mxu0 %v148
    %164 = vmatprep.subr.bf16.mxu0 0
    %165 = vmatpush1.bf16.msra.mxu0 %v149
    %166 = vmatprep.subr.bf16.mxu0 0
    %167 = vmatpush1.bf16.msra.mxu0 0
    %168 = vmatprep.subr.bf16.mxu0 0
    %169 = vmatpush1.bf16.msra.mxu0 0
    %170 = vmatprep.subr.bf16.mxu0 0
    %171 = vmatpush1.bf16.msra.mxu0 0
    %172 = vmatprep.subr.bf16.mxu0 0
    %173 = vmatpush1.bf16.msra.mxu0 0
    %174 = vmatprep.subr.bf16.mxu0 0
    %175 = vmatpush1.bf16.msra.mxu0 0
    %176 = vmatprep.subr.bf16.mxu0 0
    %177 = vmatpush1.bf16.msra.mxu0 0
    %178 = vmatprep.subr.bf16.mxu0 0
    %179 = vmatpush1.bf16.msra.mxu0 0
    %180 = vmatprep.subr.bf16.mxu0 0
    %181 = vmatpush1.bf16.msra.mxu0 0
    %182 = vmatprep.subr.bf16.mxu0 0
    %183 = vmatpush1.bf16.msra.mxu0 0
    %184 = vmatprep.subr.bf16.mxu0 0
    %185 = vmatpush1.bf16.msra.mxu0 0
    %186 = vmatprep.subr.bf16.mxu0 0
    %187 = vmatpush1.bf16.msra.mxu0 0
    %188 = vmatprep.subr.bf16.mxu0 0
    %189 = vmatpush1.bf16.msra.mxu0 0
    %190 = vmatprep.mubr.bf16.mxu0 0
    %191 = vmatmul.mubr.bf16.gmra.mrb[0].mxu0 %v156
    %v192 = vpop.f32.mrb[0].mxu0
    %v193 = vadd.f32 %v128, %v192
    %v194 = vpop.f32.mrb[0].mxu0
    %v195 = vpop.f32.mrb[0].mxu0
    %v196 = vadd.f32 %v128, %v195
    %v197 = vpop.f32.mrb[0].mxu0
    %198 = vdwg.mxu0
    %v199 = vld [vmem:[%s1] sm:$0xff]
    %v200 = vld [vmem:[%s1 + $0x8] sm:$0xff]
    %v201 = vmul.f32 %v199, %v199
    %v202 = vmul.f32 %v200, %v200
    %v203 = vmul.f32 %v201, %v199
    %v204 = vmul.f32 %v202, %v200
    %v205 = vmul.f32 %v199, 0.5
    %v206 = vmul.f32 %v200, 0.5
    %v207 = vmul.f32 %v203, 0.044715
    %v208 = vmul.f32 %v204, 0.044715
    %v209 = vadd.f32 %v199, %v207
    %v210 = vadd.f32 %v200, %v208
    %v211 = vmul.f32 %v209, 0.7978846
    %v212 = vmul.f32 %v210, 0.7978846
    %v213 = vtanh.pop %v211
    %v214 = vtanh.pop %v212
    %v215 = vadd.f32 %v213, 1.0
    %v216 = vadd.f32 %v214, 1.0
    %v217 = vmul.f32 %v205, %v215
    %v218 = vmul.f32 %v206, %v216
    %v219 = vmul.f32 %v193, %v217
    %v220 = vmul.f32 %v196, %v218
    %221 = vst.msk [vmem:[#allocation2] sm:$0xff] %vm154, %v219
    %222 = vst.msk [vmem:[#allocation2 + $0x8] sm:$0xff] %vm154, %v220
    // Predicated region
    $region26: #{mlp_lowrank_star_forward.1} parent=1 // pred_check
      _
    $region27: #{mlp_lowrank_star_forward.1} parent=1 // pred_check_branch
      %224 = sbr.rel (0) target = $region29
    $region28: #{mlp_lowrank_star_forward.1} parent=1 // pred_region
      %s226 = ssub.s32 256, 256
      %227 = vsyncadd [#allocation3], %s226
      %s228 = sshll.u32 [#allocation2], 4
      %s229 = int_to_ptr.vmem [resolvable:$true] %s228
      %234 = dma.vmem_to_hbm [thread:$0]  %s229, 256, %s6, [#allocation3], 128, 128, 8
    $region29: #{mlp_lowrank_star_forward.1} parent=1 // pred_fallthru
      _
    // Predicated region
    $region30: #{mlp_lowrank_star_forward.1} parent=1 // pred_check
      _
    $region31: #{mlp_lowrank_star_forward.1} parent=1 // pred_check_branch
      %236 = sbr.rel (0) target = $region33
    $region32: #{mlp_lowrank_star_forward.1} parent=1 // pred_region
      %237 = dma.done [#allocation3], 256
    $region33: #{mlp_lowrank_star_forward.1} parent=1 // pred_fallthru
      _
    %238 = vsyncpa [#allocation3], 1

</llo_original>
